<compile_context>
chip_gen: v7x
topology: tpu7x:2x2x1
jax: 0.10.0
libtpu: 0.0.40
codegen_flags: <defaults>
</compile_context>

<pallas_src>
import math

import jax
import jax.numpy as jnp
from jax import lax
from jax.experimental import pallas as pl
from jax.experimental.pallas import tpu as pltpu


_INV_SQRT2 = 1.0 / math.sqrt(2.0)


def _round_up(x, m):
    return ((x + m - 1) // m) * m


# ----------------------------------------------------------------------------
# Pallas kernel: fused  y = GELU(x @ W1 + b1) @ W2 + b2   (dropout p=0.0 -> id)
# grid = (batch tiles i, OUT tiles j); j is the inner sequential axis so the
# hidden activations for the current batch tile are computed once (j == 0) and
# cached in VMEM scratch for all OUT tiles.
# ----------------------------------------------------------------------------
def _mlp_kernel(x_ref, w1_ref, b1_ref, w2_ref, b2_ref, o_ref, h_ref):
    j = pl.program_id(1)

    @pl.when(j == 0)
    def _():
        # fc1 on the MXU: bf16 x bf16 -> f32 accumulate.
        h = jnp.dot(x_ref[...], w1_ref[...], preferred_element_type=jnp.float32)
        h = h + b1_ref[...]                                   # [bm,HID] + [1,HID]
        # exact (erf-based) GELU in f32, matching torch.nn.GELU() default
        h = 0.5 * h * (1.0 + lax.erf(h * _INV_SQRT2))
        h_ref[...] = h.astype(h_ref.dtype)                    # cache as bf16

    # fc2 (current OUT tile) on the MXU; dropout(p=0) is the identity.
    y = jnp.dot(h_ref[...], w2_ref[...], preferred_element_type=jnp.float32)
    o_ref[...] = (y + b2_ref[...]).astype(o_ref.dtype)


def mlp_pallas(x, w1, b1, w2, b2, *, bm=128, tn=256):
    """x: [B, IN]; w1: [IN, HID]; b1: [HID]; w2: [HID, OUT]; b2: [OUT]."""
    B, IN = x.shape
    HID = w1.shape[1]
    OUT = w2.shape[1]

    # Adaptive tiles (keep (8,128) layout legality; no host-side padding).
    bm = min(bm, _round_up(B, 8))
    tn = min(tn, _round_up(OUT, 128))
    grid_i = pl.cdiv(B, bm)
    grid_j = pl.cdiv(OUT, tn)

    # bf16 operands for the MXU, f32 biases / accumulation.
    xb = x.astype(jnp.bfloat16)
    w1b = w1.astype(jnp.bfloat16)
    w2b = w2.astype(jnp.bfloat16)
    b1r = b1.reshape(1, HID).astype(jnp.float32)
    b2r = b2.reshape(1, OUT).astype(jnp.float32)

    # VMEM budget: double-buffered in/out blocks + bf16 hidden scratch + slack.
    tile_bytes = (bm * IN * 2 + IN * HID * 2 + HID * 4
                  + HID * tn * 2 + tn * 4 + bm * tn * 4)
    vmem_limit = int(min(100 * 2**20,
                         max(32 * 2**20, 2 * tile_bytes + bm * HID * 2 + 2**22)))

    cost = pl.CostEstimate(
        flops=2 * B * (IN * HID + HID * OUT),
        transcendentals=B * HID,
        bytes_accessed=(B * IN * 2 + IN * HID * 2 + HID * OUT * 2
                        + (HID + OUT) * 4 + B * OUT * 4),
    )

    out = pl.pallas_call(
        _mlp_kernel,
        out_shape=jax.ShapeDtypeStruct((B, OUT), jnp.float32),
        grid_spec=pltpu.PrefetchScalarGridSpec(
            num_scalar_prefetch=0,
            grid=(grid_i, grid_j),
            in_specs=[
                pl.BlockSpec((bm, IN), lambda i, j: (i, 0)),     # x tile (j-invariant)
                pl.BlockSpec((IN, HID), lambda i, j: (0, 0)),    # W1 (grid-invariant)
                pl.BlockSpec((1, HID), lambda i, j: (0, 0)),     # b1
                pl.BlockSpec((HID, tn), lambda i, j: (0, j)),    # W2 OUT tile
                pl.BlockSpec((1, tn), lambda i, j: (0, j)),      # b2 OUT tile
            ],
            out_specs=pl.BlockSpec((bm, tn), lambda i, j: (i, j)),
            scratch_shapes=[pltpu.VMEM((bm, HID), jnp.bfloat16)],
        ),
        compiler_params=pltpu.CompilerParams(
            dimension_semantics=("parallel", "arbitrary"),
            vmem_limit_bytes=vmem_limit,
        ),
        cost_estimate=cost,
    )(xb, w1b, b1r, w2b, b2r)
    return out


# ----------------------------------------------------------------------------
# Deterministic stand-in encoder (plain JAX glue, frozen / no_grad semantics)
# ----------------------------------------------------------------------------
def make_stub_encoder_params(key, C, H, W, D, n_blocks, patch=4):
    n_patches = (H // patch) * (W // patch)
    patch_dim = C * patch * patch
    k_embed, k_cls, *k_blocks = jax.random.split(key, 2 + n_blocks)
    return {
        "embed_w": 0.02 * jax.random.normal(k_embed, (patch_dim, D), jnp.float32),
        "cls": 0.02 * jax.random.normal(k_cls, (1, 1, D), jnp.float32),
        "block_w": [
            0.02 * jax.random.normal(kb, (D, D), jnp.float32) for kb in k_blocks
        ],
        "patch": patch,
        "n_patches": n_patches,
        "D": D,
    }


def stub_get_intermediate_layers(params, image, n_last_blocks):
    """Returns a list of n_last_blocks tensors of shape [B, 1 + n_patches, D]."""
    B, C, H, W = image.shape
    p = params["patch"]
    x = image.reshape(B, C, H // p, p, W // p, p)
    x = jnp.transpose(x, (0, 2, 4, 1, 3, 5)).reshape(B, -1, C * p * p)
    tokens = x @ params["embed_w"]                             # [B, N, D]
    cls = jnp.broadcast_to(params["cls"], (B, 1, params["D"]))
    h = jnp.concatenate([cls, tokens], axis=1)                 # [B, 1+N, D]
    outs = []
    for w in params["block_w"]:
        h = jnp.tanh(h @ w) + h
        outs.append(h)
    return outs[-n_last_blocks:]


# ----------------------------------------------------------------------------
# BilateralMLP forward (encode in JAX glue, MLP head in Pallas)
# ----------------------------------------------------------------------------
def bilateral_mlp_forward(mlp_params, enc_params, n_last_blocks, image, contra,
                          avgpool=False):
    def encode_one(img):
        inter = stub_get_intermediate_layers(enc_params, img, n_last_blocks)
        return jnp.concatenate([t[:, 0] for t in inter], axis=-1)   # CLS concat

    img_out = encode_one(image)
    con_out = encode_one(contra)
    # avgpool=False branch (module default)
    x = jnp.concatenate([img_out, con_out], axis=1)                 # [B, in_features]
    x = x.reshape(x.shape[0], -1)

    return mlp_pallas(
        x,
        mlp_params["w1"], mlp_params["b1"],
        mlp_params["w2"], mlp_params["b2"],
    )


# pure-JAX reference of the MLP head (same bf16-operand / f32-accumulate recipe)
def mlp_ref(x, w1, b1, w2, b2):
    xb = x.astype(jnp.bfloat16)
    w1b = w1.astype(jnp.bfloat16)
    w2b = w2.astype(jnp.bfloat16)
    h = jnp.dot(xb, w1b, preferred_element_type=jnp.float32) + b1.astype(jnp.float32)
    h = 0.5 * h * (1.0 + lax.erf(h * _INV_SQRT2))
    return jnp.dot(h.astype(jnp.bfloat16), w2b,
                   preferred_element_type=jnp.float32) + b2.astype(jnp.float32)


if __name__ == "__main__":
    key = jax.random.PRNGKey(0)
    k_img, k_con, k_enc, k_w1, k_w2 = jax.random.split(key, 5)

    # small shapes
    B, C, H, W = 2, 4, 16, 16
    D = 32
    n_last_blocks = 2
    in_features = 2 * n_last_blocks * D      # 128 (image + contralateral CLS concat)
    hidden_features = in_features            # module defaults
    out_features = in_features

    image = jax.random.normal(k_img, (B, C, H, W), jnp.float32)
    contra = jax.random.normal(k_con, (B, C, H, W), jnp.float32)

    enc_params = make_stub_encoder_params(k_enc, C, H, W, D, n_blocks=3)

    # nn.Linear weights: normal(0, 0.01), bias zero; stored transposed [in, out]
    mlp_params = {
        "w1": 0.01 * jax.random.normal(k_w1, (in_features, hidden_features), jnp.float32),
        "b1": jnp.zeros((hidden_features,), jnp.float32),
        "w2": 0.01 * jax.random.normal(k_w2, (hidden_features, out_features), jnp.float32),
        "b2": jnp.zeros((out_features,), jnp.float32),
    }

    out = bilateral_mlp_forward(mlp_params, enc_params, n_last_blocks, image, contra)
    out = jax.block_until_ready(out)
    assert out.shape == (B, out_features), out.shape

    # correctness check of the Pallas MLP head against a matched-precision JAX ref
    def encode_one(img):
        inter = stub_get_intermediate_layers(enc_params, img, n_last_blocks)
        return jnp.concatenate([t[:, 0] for t in inter], axis=-1)

    x_ref = jnp.concatenate([encode_one(image), encode_one(contra)], axis=1)
    ref = mlp_ref(x_ref, mlp_params["w1"], mlp_params["b1"],
                  mlp_params["w2"], mlp_params["b2"])
    assert jnp.all(jnp.isfinite(out))
    assert jnp.allclose(out, ref, atol=1e-5, rtol=1e-2), float(jnp.max(jnp.abs(out - ref)))

    print("KERNEL_OK")
</pallas_src>

<mosaic_0001>
module attributes {stable_mosaic.version = 11 : i64} {
  func.func @_mlp_kernel(%arg0: i32, %arg1: i32, %arg2: memref<8x128xbf16, #tpu.memory_space<vmem>>, %arg3: memref<128x128xbf16, #tpu.memory_space<vmem>>, %arg4: memref<1x128xf32, #tpu.memory_space<vmem>>, %arg5: memref<128x128xbf16, #tpu.memory_space<vmem>>, %arg6: memref<1x128xf32, #tpu.memory_space<vmem>>, %arg7: memref<8x128xf32, #tpu.memory_space<vmem>>, %arg8: memref<8x128xbf16, #tpu.memory_space<vmem>>) attributes {dimension_semantics = [#tpu.dimension_semantics<parallel>, #tpu.dimension_semantics<arbitrary>], iteration_bounds = array<i64: 1, 1>, scalar_prefetch = 0 : i64, scratch_operands = 1 : i64, tpu.core_type = #tpu.core_type<tc>, window_params = [{transform_indices = @transform_0, window_bounds = array<i64: 8, 128>}, {pipeline_mode = #tpu.pipeline_mode<synchronous>, transform_indices = @transform_1, window_bounds = array<i64: 128, 128>}, {pipeline_mode = #tpu.pipeline_mode<synchronous>, transform_indices = @transform_2, window_bounds = array<i64: 1, 128>}, {transform_indices = @transform_3, window_bounds = array<i64: 128, 128>}, {transform_indices = @transform_4, window_bounds = array<i64: 1, 128>}, {transform_indices = @transform_5, window_bounds = array<i64: 8, 128>}]} {
    %c0_i32 = arith.constant 0 : i32
    %0 = arith.cmpi eq, %arg1, %c0_i32 : i32
    %1 = arith.extui %0 : i1 to i32
    %c0_i32_0 = arith.constant 0 : i32
    %2 = arith.cmpi ne, %1, %c0_i32_0 : i32
    scf.if %2 {
      %c0_8 = arith.constant 0 : index
      %c0_9 = arith.constant 0 : index
      %10 = vector.load %arg2[%c0_8, %c0_9] : memref<8x128xbf16, #tpu.memory_space<vmem>>, vector<8x128xbf16>
      %c0_10 = arith.constant 0 : index
      %c0_11 = arith.constant 0 : index
      %11 = vector.load %arg3[%c0_10, %c0_11] : memref<128x128xbf16, #tpu.memory_space<vmem>>, vector<128x128xbf16>
      %cst_12 = arith.constant dense<0.000000e+00> : vector<8x128xf32>
      %12 = tpu.matmul %10, %11, %cst_12 {dimension_numbers = #tpu.dot_dimension_numbers<[1], [0], [0], [1], [0, 0, 1, 1], [], []>} : vector<8x128xbf16>, vector<128x128xbf16>, vector<8x128xf32> -> vector<8x128xf32>
      %c0_13 = arith.constant 0 : index
      %c0_14 = arith.constant 0 : index
      %13 = vector.load %arg4[%c0_13, %c0_14] : memref<1x128xf32, #tpu.memory_space<vmem>>, vector<1x128xf32>
      %14 = vector.broadcast %13 : vector<1x128xf32> to vector<8x128xf32>
      %15 = arith.addf %12, %14 : vector<8x128xf32>
      %cst_15 = arith.constant 5.000000e-01 : f32
      %16 = vector.broadcast %cst_15 : f32 to vector<8x128xf32>
      %17 = arith.mulf %16, %15 : vector<8x128xf32>
      %cst_16 = arith.constant 0.707106769 : f32
      %18 = vector.broadcast %cst_16 : f32 to vector<8x128xf32>
      %19 = arith.mulf %15, %18 : vector<8x128xf32>
      %20 = math.erf %19 : vector<8x128xf32>
      %cst_17 = arith.constant 1.000000e+00 : f32
      %21 = vector.broadcast %cst_17 : f32 to vector<8x128xf32>
      %22 = arith.addf %21, %20 : vector<8x128xf32>
      %23 = arith.mulf %17, %22 : vector<8x128xf32>
      %24 = arith.truncf %23 : vector<8x128xf32> to vector<8x128xbf16>
      %c0_18 = arith.constant 0 : index
      %c0_19 = arith.constant 0 : index
      %25 = vector.load %arg8[%c0_18, %c0_19] : memref<8x128xbf16, #tpu.memory_space<vmem>>, vector<8x128xbf16>
      tpu.vector_store %arg8[%c0_18, %c0_19], %24 {strides = array<i32>} : memref<8x128xbf16, #tpu.memory_space<vmem>>, vector<8x128xbf16>,
    } else {
    }
    %c0 = arith.constant 0 : index
    %c0_1 = arith.constant 0 : index
    %3 = vector.load %arg8[%c0, %c0_1] : memref<8x128xbf16, #tpu.memory_space<vmem>>, vector<8x128xbf16>
    %c0_2 = arith.constant 0 : index
    %c0_3 = arith.constant 0 : index
    %4 = vector.load %arg5[%c0_2, %c0_3] : memref<128x128xbf16, #tpu.memory_space<vmem>>, vector<128x128xbf16>
    %cst = arith.constant dense<0.000000e+00> : vector<8x128xf32>
    %5 = tpu.matmul %3, %4, %cst {dimension_numbers = #tpu.dot_dimension_numbers<[1], [0], [0], [1], [0, 0, 1, 1], [], []>} : vector<8x128xbf16>, vector<128x128xbf16>, vector<8x128xf32> -> vector<8x128xf32>
    %c0_4 = arith.constant 0 : index
    %c0_5 = arith.constant 0 : index
    %6 = vector.load %arg6[%c0_4, %c0_5] : memref<1x128xf32, #tpu.memory_space<vmem>>, vector<1x128xf32>
    %7 = vector.broadcast %6 : vector<1x128xf32> to vector<8x128xf32>
    %8 = arith.addf %5, %7 : vector<8x128xf32>
    %c0_6 = arith.constant 0 : index
    %c0_7 = arith.constant 0 : index
    %9 = vector.load %arg7[%c0_6, %c0_7] : memref<8x128xf32, #tpu.memory_space<vmem>>, vector<8x128xf32>
    tpu.vector_store %arg7[%c0_6, %c0_7], %8 {strides = array<i32>} : memref<8x128xf32, #tpu.memory_space<vmem>>, vector<8x128xf32>,
    return
  }
  func.func @transform_0(%arg0: i32, %arg1: i32) -> (i32, i32) {
    %c0_i32 = arith.constant 0 : i32
    %c0_i32_0 = arith.constant 0 : i32
    return %arg0, %c0_i32 : i32, i32
  }
  func.func @transform_1(%arg0: i32, %arg1: i32) -> (i32, i32) {
    %c0_i32 = arith.constant 0 : i32
    %c0_i32_0 = arith.constant 0 : i32
    %c0_i32_1 = arith.constant 0 : i32
    return %c0_i32, %c0_i32_0 : i32, i32
  }
  func.func @transform_2(%arg0: i32, %arg1: i32) -> (i32, i32) {
    %c0_i32 = arith.constant 0 : i32
    %c0_i32_0 = arith.constant 0 : i32
    %c0_i32_1 = arith.constant 0 : i32
    return %c0_i32, %c0_i32_0 : i32, i32
  }
  func.func @transform_3(%arg0: i32, %arg1: i32) -> (i32, i32) {
    %c0_i32 = arith.constant 0 : i32
    %c0_i32_0 = arith.constant 0 : i32
    return %c0_i32, %arg1 : i32, i32
  }
  func.func @transform_4(%arg0: i32, %arg1: i32) -> (i32, i32) {
    %c0_i32 = arith.constant 0 : i32
    %c0_i32_0 = arith.constant 0 : i32
    return %c0_i32, %arg1 : i32, i32
  }
  func.func @transform_5(%arg0: i32, %arg1: i32) -> (i32, i32) {
    %c0_i32 = arith.constant 0 : i32
    return %arg0, %arg1 : i32, i32
  }
}

</mosaic_0001>

<llo_original>
// kernel: tpu_custom_call.1
$region0: #{tpu_custom_call.1}
  #allocation0 [shape = 'u32[]', space=smem, size = 0x4, offset = 0x4, fixed_abs, tag = 'smem constant byte address 0x4 - core index']
  #allocation1 [shape = 'u32[144,128]{1,0:T(1,128)}', space=vmem, size = 0x12000, scoped, tag = 'internal scratch']
  #allocation2 [shape = 'bf16[8,128]{1,0:T(8,128)(2,1)}', space=vmem, size = 0x800, scoped, tag = 'scratch operand']
  %s0 = inlined_call_operand.hbm [shape: bf16[2,128], index: 0, kind: input, shape index: {}]
  %s1 = inlined_call_operand.hbm [shape: bf16[128,128], index: 1, kind: input, shape index: {}]
  %s2 = inlined_call_operand.vmem [shape: f32[1,128], index: 2, kind: input, shape index: {}]
  %s3 = inlined_call_operand.hbm [shape: bf16[128,128], index: 3, kind: input, shape index: {}]
  %s4 = inlined_call_operand.vmem [shape: f32[1,128], index: 4, kind: input, shape index: {}]
  %s5 = inlined_call_operand.hbm [shape: f32[2,128], index: 5, kind: output, shape index: {}]
  %s6 = sld [smem:[#allocation0]]
  $region46: #{tpu_custom_call.1} parent=0
    _
  %s8 = ssub.s32 1, %s6
  %s9 = scalar_select 0, %s8, %s6
  $region1: #{tpu_custom_call.1} parent=0
    #allocation3 [shape = 'u8[2048]{0}', space=vmem, size = 0x800, scoped, tag = 'input window, operand 0, single buffered']
    #allocation4 [shape = 's32[1]{0}', space=sflag, size = 0x4, scoped, tag = 'scoped memory for tpu_custom_call.1']
    #allocation5 [shape = 's32[1]{0}', space=sflag, size = 0x4, scoped, tag = 'scoped memory for tpu_custom_call.1']
    #allocation6 [shape = 'u8[32768]{0}', space=vmem, size = 0x8000, scoped, tag = 'input window, operand 1, single buffered']
    #allocation7 [shape = 's32[1]{0}', space=sflag, size = 0x4, scoped, tag = 'scoped memory for tpu_custom_call.1']
    #allocation8 [shape = 'u8[32768]{0}', space=vmem, size = 0x8000, scoped, tag = 'input window, operand 3, single buffered']
    #allocation9 [shape = 'u8[4096]{0}', space=vmem, size = 0x1000, scoped, tag = 'output window, operand 0, single buffered']
    %10 = vsyncpa [#allocation4], 0
    %11 = vsyncpa [#allocation7], 0
    %12 = vsyncpa [#allocation5], 0
    // Predicated region
    $region2: #{tpu_custom_call.1} parent=1 // pred_check
      _
    $region3: #{tpu_custom_call.1} parent=1 // pred_check_branch
      %14 = sbr.rel (0) target = $region5
    $region4: #{tpu_custom_call.1} parent=1 // pred_region
      %s16 = ssub.s32 64, 16
      %17 = vsyncadd [#allocation4], %s16
      %s18 = sshll.u32 [#allocation3], 4
      %s19 = int_to_ptr.vmem [resolvable:$true] %s18
      %24 = dma.hbm_to_vmem [thread:$0]  %s0, 16, %s19, [#allocation4], 16, 16, 1
    $region5: #{tpu_custom_call.1} parent=1 // pred_fallthru
      _
    // Predicated region
    $region6: #{tpu_custom_call.1} parent=1 // pred_check
      _
    $region7: #{tpu_custom_call.1} parent=1 // pred_check_branch
      %26 = sbr.rel (0) target = $region9
    $region8: #{tpu_custom_call.1} parent=1 // pred_region
      %s28 = ssub.s32 1024, 1024
      %29 = vsyncadd [#allocation7], %s28
      %s30 = sshll.u32 [#allocation6], 4
      %s31 = int_to_ptr.vmem [resolvable:$true] %s30
      %36 = dma.hbm_to_vmem [thread:$0]  %s1, 1024, %s31, [#allocation7], 64, 64, 4
    $region9: #{tpu_custom_call.1} parent=1 // pred_fallthru
      _
    // Predicated region
    $region10: #{tpu_custom_call.1} parent=1 // pred_check
      _
    $region11: #{tpu_custom_call.1} parent=1 // pred_check_branch
      %38 = sbr.rel (0) target = $region13
    $region12: #{tpu_custom_call.1} parent=1 // pred_region
      _
    $region13: #{tpu_custom_call.1} parent=1 // pred_fallthru
      _
    // Predicated region
    $region14: #{tpu_custom_call.1} parent=1 // pred_check
      _
    $region15: #{tpu_custom_call.1} parent=1 // pred_check_branch
      %40 = sbr.rel (0) target = $region17
    $region16: #{tpu_custom_call.1} parent=1 // pred_region
      %s42 = ssub.s32 1024, 1024
      %43 = vsyncadd [#allocation7], %s42
      %s44 = sshll.u32 [#allocation8], 4
      %s45 = int_to_ptr.vmem [resolvable:$true] %s44
      %50 = dma.hbm_to_vmem [thread:$0]  %s3, 1024, %s45, [#allocation7], 64, 64, 4
    $region17: #{tpu_custom_call.1} parent=1 // pred_fallthru
      _
    // Predicated region
    $region18: #{tpu_custom_call.1} parent=1 // pred_check
      _
    $region19: #{tpu_custom_call.1} parent=1 // pred_check_branch
      %52 = sbr.rel (0) target = $region21
    $region20: #{tpu_custom_call.1} parent=1 // pred_region
      _
    $region21: #{tpu_custom_call.1} parent=1 // pred_fallthru
      _
    // Predicated region
    $region22: #{tpu_custom_call.1} parent=1 // pred_check
      _
    $region23: #{tpu_custom_call.1} parent=1 // pred_check_branch
      %54 = sbr.rel (0) target = $region25
    $region24: #{tpu_custom_call.1} parent=1 // pred_region
      %55 = dma.done [#allocation4], 64
    $region25: #{tpu_custom_call.1} parent=1 // pred_fallthru
      _
    // Predicated region
    $region26: #{tpu_custom_call.1} parent=1 // pred_check
      _
    $region27: #{tpu_custom_call.1} parent=1 // pred_check_branch
      %57 = sbr.rel (0) target = $region29
    $region28: #{tpu_custom_call.1} parent=1 // pred_region
      %58 = dma.done [#allocation7], 1024
    $region29: #{tpu_custom_call.1} parent=1 // pred_fallthru
      _
    // Predicated region
    $region30: #{tpu_custom_call.1} parent=1 // pred_check
      _
    $region31: #{tpu_custom_call.1} parent=1 // pred_check_branch
      %60 = sbr.rel (0) target = $region33
    $region32: #{tpu_custom_call.1} parent=1 // pred_region
      %61 = dma.done [#allocation7], 1024
    $region33: #{tpu_custom_call.1} parent=1 // pred_fallthru
      _
    %p63 = scmp.eq.s32.totalorder 0, 0
    // Predicated region
    $region34: #{tpu_custom_call.1} parent=1 // pred_check
      %p64 = pneg %p63
    $region35: #{tpu_custom_call.1} parent=1 // pred_check_branch
      %66 = sbr.rel (%p64) target = $region37
    $region36: #{tpu_custom_call.1} parent=1 // pred_region
      %v67 = vld [vmem:[#allocation3] sm:$0x1]
      %v68 = vld [vmem:[#allocation3 + $0x1] sm:$0x1]
      %v69 = vld [vmem:[#allocation3 + $0x2] sm:$0x1]
      %v70 = vld [vmem:[#allocation3 + $0x3] sm:$0x1]
      %v71 = vld [vmem:[#allocation6] sm:$0xf]
      %v72 = vld [vmem:[#allocation6 + $0x4] sm:$0xf]
      %v73 = vld [vmem:[#allocation6 + $0x8] sm:$0xf]
      %v74 = vld [vmem:[#allocation6 + $0xc] sm:$0xf]
      %v75 = vld [vmem:[#allocation6 + $0x10] sm:$0xf]
      %v76 = vld [vmem:[#allocation6 + $0x14] sm:$0xf]
      %v77 = vld [vmem:[#allocation6 + $0x18] sm:$0xf]
      %v78 = vld [vmem:[#allocation6 + $0x1c] sm:$0xf]
      %v79 = vld [vmem:[#allocation6 + $0x20] sm:$0xf]
      %v80 = vld [vmem:[#allocation6 + $0x24] sm:$0xf]
      %v81 = vld [vmem:[#allocation6 + $0x28] sm:$0xf]
      %v82 = vld [vmem:[#allocation6 + $0x2c] sm:$0xf]
      %v83 = vld [vmem:[#allocation6 + $0x30] sm:$0xf]
      %v84 = vld [vmem:[#allocation6 + $0x34] sm:$0xf]
      %v85 = vld [vmem:[#allocation6 + $0x38] sm:$0xf]
      %v86 = vld [vmem:[#allocation6 + $0x3c] sm:$0xf]
      %v87 = vld [vmem:[%s2] sm:$0x1]
      %v89 = vlaneseq
      %v90 = vshrl.u32 %v89, 7
      %v91 = vsub.s32 0, %v90
      %v92 = vrot.slane %v87, %v91
      %v98 = vcombine.low %v67, %v68
      %v99 = vcombine.low %v69, %v70
      %v101 = vunpack.c.l.s4 1966171168
      %v102 = vunpack.c.0.s8 %v101
      %v103 = vlaneseq
      %v104 = vshrl.u32 %v103, 7
      %v105 = vsub.s32 %v102, %v104
      %v106 = vrot.slane %v98, %v105
      %v108 = vunpack.c.l.s4 1966171168
      %v109 = vunpack.c.0.s8 %v108
      %v110 = vlaneseq
      %v111 = vshrl.u32 %v110, 7
      %v112 = vsub.s32 %v109, %v111
      %v113 = vrot.slane %v99, %v112
      %v114 = vcombine.low %v106, %v113
      %v116 = vunpack.c.l.s4 1966171168
      %v117 = vunpack.c.0.s8 %v116
      %v118 = vlaneseq
      %v119 = vshrl.u32 %v118, 7
      %v120 = vsub.s32 %v117, %v119
      %v121 = vrot.slane %v114, %v120
      %v139 = vunpack.c.l.b16 %v71
      %v140 = vunpack.c.l.b16 %v72
      %v141 = vunpack.c.l.b16 %v73
      %v142 = vunpack.c.l.b16 %v74
      %v143 = vunpack.c.l.b16 %v75
      %v144 = vunpack.c.l.b16 %v76
      %v145 = vunpack.c.l.b16 %v77
      %v146 = vunpack.c.l.b16 %v78
      %v147 = vunpack.c.l.b16 %v79
      %v148 = vunpack.c.l.b16 %v80
      %v149 = vunpack.c.l.b16 %v81
      %v150 = vunpack.c.l.b16 %v82
      %v151 = vunpack.c.l.b16 %v83
      %v152 = vunpack.c.l.b16 %v84
      %v153 = vunpack.c.l.b16 %v85
      %v154 = vunpack.c.l.b16 %v86
      %v155 = vpack.c.b16 %v140, %v139
      %v156 = vpack.c.b16 %v142, %v141
      %v157 = vpack.c.b16 %v144, %v143
      %v158 = vpack.c.b16 %v146, %v145
      %v159 = vpack.c.b16 %v148, %v147
      %v160 = vpack.c.b16 %v150, %v149
      %v161 = vpack.c.b16 %v152, %v151
      %v162 = vpack.c.b16 %v154, %v153
      %171 = vmatprep.subr.bf16.mxu0 0
      %172 = vmatpush1.bf16.msra.mxu0 %v155
      %173 = vmatprep.subr.bf16.mxu0 0
      %174 = vmatpush1.bf16.msra.mxu0 %v156
      %175 = vmatprep.subr.bf16.mxu0 0
      %176 = vmatpush1.bf16.msra.mxu0 %v157
      %177 = vmatprep.subr.bf16.mxu0 0
      %178 = vmatpush1.bf16.msra.mxu0 %v158
      %179 = vmatprep.subr.bf16.mxu0 0
      %180 = vmatpush1.bf16.msra.mxu0 %v159
      %181 = vmatprep.subr.bf16.mxu0 0
      %182 = vmatpush1.bf16.msra.mxu0 %v160
      %183 = vmatprep.subr.bf16.mxu0 0
      %184 = vmatpush1.bf16.msra.mxu0 %v161
      %185 = vmatprep.subr.bf16.mxu0 0
      %186 = vmatpush1.bf16.msra.mxu0 %v162
      %187 = vmatprep.subr.bf16.mxu0 0
      %188 = vmatpush1.bf16.msra.mxu0 0
      %189 = vmatprep.subr.bf16.mxu0 0
      %190 = vmatpush1.bf16.msra.mxu0 0
      %191 = vmatprep.subr.bf16.mxu0 0
      %192 = vmatpush1.bf16.msra.mxu0 0
      %193 = vmatprep.subr.bf16.mxu0 0
      %194 = vmatpush1.bf16.msra.mxu0 0
      %195 = vmatprep.subr.bf16.mxu0 0
      %196 = vmatpush1.bf16.msra.mxu0 0
      %197 = vmatprep.subr.bf16.mxu0 0
      %198 = vmatpush1.bf16.msra.mxu0 0
      %199 = vmatprep.subr.bf16.mxu0 0
      %200 = vmatpush1.bf16.msra.mxu0 0
      %201 = vmatprep.subr.bf16.mxu0 0
      %202 = vmatpush1.bf16.msra.mxu0 0
      %203 = vmatprep.mubr.bf16.mxu0 0
      %204 = vmatmul.mubr.bf16.gmra.mrb[0].mxu0 %v121
      %v205 = vpop.f32.mrb[0].mxu0
      %v206 = vadd.f32 %v92, %v205
      %v207 = vpop.f32.mrb[0].mxu0
      %v208 = vpop.f32.mrb[0].mxu0
      %v209 = vpop.f32.mrb[0].mxu0
      %210 = vdwg.mxu0
      %v211 = vmul.f32 %v206, 0.5
      %v212 = vmul.f32 %v206, 0.70710677
      %v213 = verf.f32.pop %v212
      %v214 = vadd.f32 %v213, 1.0
      %v215 = vmul.f32 %v211, %v214
      %v216 = vpack.c.bf16 %v215, %v215
      %217 = vst [vmem:[#allocation2] sm:$0xf] %v216
    $region37: #{tpu_custom_call.1} parent=1 // pred_fallthru
      _
    %v218 = vld [vmem:[#allocation2] sm:$0xf]
    %v219 = vld [vmem:[#allocation8] sm:$0xf]
    %v220 = vld [vmem:[#allocation8 + $0x4] sm:$0xf]
    %v221 = vld [vmem:[#allocation8 + $0x8] sm:$0xf]
    %v222 = vld [vmem:[#allocation8 + $0xc] sm:$0xf]
    %v223 = vld [vmem:[#allocation8 + $0x10] sm:$0xf]
    %v224 = vld [vmem:[#allocation8 + $0x14] sm:$0xf]
    %v225 = vld [vmem:[#allocation8 + $0x18] sm:$0xf]
    %v226 = vld [vmem:[#allocation8 + $0x1c] sm:$0xf]
    %v227 = vld [vmem:[#allocation8 + $0x20] sm:$0xf]
    %v228 = vld [vmem:[#allocation8 + $0x24] sm:$0xf]
    %v229 = vld [vmem:[#allocation8 + $0x28] sm:$0xf]
    %v230 = vld [vmem:[#allocation8 + $0x2c] sm:$0xf]
    %v231 = vld [vmem:[#allocation8 + $0x30] sm:$0xf]
    %v232 = vld [vmem:[#allocation8 + $0x34] sm:$0xf]
    %v233 = vld [vmem:[#allocation8 + $0x38] sm:$0xf]
    %v234 = vld [vmem:[#allocation8 + $0x3c] sm:$0xf]
    %v235 = vld [vmem:[%s4] sm:$0x1]
    %v237 = vlaneseq
    %v238 = vshrl.u32 %v237, 7
    %v239 = vsub.s32 0, %v238
    %v240 = vrot.slane %v235, %v239
    %v258 = vunpack.c.l.b16 %v219
    %v259 = vunpack.c.l.b16 %v220
    %v260 = vunpack.c.l.b16 %v221
    %v261 = vunpack.c.l.b16 %v222
    %v262 = vunpack.c.l.b16 %v223
    %v263 = vunpack.c.l.b16 %v224
    %v264 = vunpack.c.l.b16 %v225
    %v265 = vunpack.c.l.b16 %v226
    %v266 = vunpack.c.l.b16 %v227
    %v267 = vunpack.c.l.b16 %v228
    %v268 = vunpack.c.l.b16 %v229
    %v269 = vunpack.c.l.b16 %v230
    %v270 = vunpack.c.l.b16 %v231
    %v271 = vunpack.c.l.b16 %v232
    %v272 = vunpack.c.l.b16 %v233
    %v273 = vunpack.c.l.b16 %v234
    %v274 = vpack.c.b16 %v259, %v258
    %v275 = vpack.c.b16 %v261, %v260
    %v276 = vpack.c.b16 %v263, %v262
    %v277 = vpack.c.b16 %v265, %v264
    %v278 = vpack.c.b16 %v267, %v266
    %v279 = vpack.c.b16 %v269, %v268
    %v280 = vpack.c.b16 %v271, %v270
    %v281 = vpack.c.b16 %v273, %v272
    %290 = vmatprep.subr.bf16.mxu0 0
    %291 = vmatpush1.bf16.msra.mxu0 %v274
    %292 = vmatprep.subr.bf16.mxu0 0
    %293 = vmatpush1.bf16.msra.mxu0 %v275
    %294 = vmatprep.subr.bf16.mxu0 0
    %295 = vmatpush1.bf16.msra.mxu0 %v276
    %296 = vmatprep.subr.bf16.mxu0 0
    %297 = vmatpush1.bf16.msra.mxu0 %v277
    %298 = vmatprep.subr.bf16.mxu0 0
    %299 = vmatpush1.bf16.msra.mxu0 %v278
    %300 = vmatprep.subr.bf16.mxu0 0
    %301 = vmatpush1.bf16.msra.mxu0 %v279
    %302 = vmatprep.subr.bf16.mxu0 0
    %303 = vmatpush1.bf16.msra.mxu0 %v280
    %304 = vmatprep.subr.bf16.mxu0 0
    %305 = vmatpush1.bf16.msra.mxu0 %v281
    %306 = vmatprep.subr.bf16.mxu0 0
    %307 = vmatpush1.bf16.msra.mxu0 0
    %308 = vmatprep.subr.bf16.mxu0 0
    %309 = vmatpush1.bf16.msra.mxu0 0
    %310 = vmatprep.subr.bf16.mxu0 0
    %311 = vmatpush1.bf16.msra.mxu0 0
    %312 = vmatprep.subr.bf16.mxu0 0
    %313 = vmatpush1.bf16.msra.mxu0 0
    %314 = vmatprep.subr.bf16.mxu0 0
    %315 = vmatpush1.bf16.msra.mxu0 0
    %316 = vmatprep.subr.bf16.mxu0 0
    %317 = vmatpush1.bf16.msra.mxu0 0
    %318 = vmatprep.subr.bf16.mxu0 0
    %319 = vmatpush1.bf16.msra.mxu0 0
    %320 = vmatprep.subr.bf16.mxu0 0
    %321 = vmatpush1.bf16.msra.mxu0 0
    %322 = vmatprep.mubr.bf16.mxu0 0
    %323 = vmatmul.mubr.bf16.gmra.mrb[0].mxu0 %v218
    %v324 = vpop.f32.mrb[0].mxu0
    %v325 = vadd.f32 %v240, %v324
    %v326 = vpop.f32.mrb[0].mxu0
    %v327 = vpop.f32.mrb[0].mxu0
    %v328 = vpop.f32.mrb[0].mxu0
    %329 = vdwg.mxu0
    %330 = vst [vmem:[#allocation9] sm:$0xff] %v325
    // Predicated region
    $region38: #{tpu_custom_call.1} parent=1 // pred_check
      _
    $region39: #{tpu_custom_call.1} parent=1 // pred_check_branch
      %332 = sbr.rel (0) target = $region41
    $region40: #{tpu_custom_call.1} parent=1 // pred_region
      %s334 = ssub.s32 128, 32
      %335 = vsyncadd [#allocation5], %s334
      %s336 = sshll.u32 [#allocation9], 4
      %s337 = int_to_ptr.vmem [resolvable:$true] %s336
      %342 = dma.vmem_to_hbm [thread:$0]  %s337, 32, %s5, [#allocation5], 32, 32, 2
    $region41: #{tpu_custom_call.1} parent=1 // pred_fallthru
      _
    // Predicated region
    $region42: #{tpu_custom_call.1} parent=1 // pred_check
      _
    $region43: #{tpu_custom_call.1} parent=1 // pred_check_branch
      %344 = sbr.rel (0) target = $region45
    $region44: #{tpu_custom_call.1} parent=1 // pred_region
      %345 = dma.done [#allocation5], 128
    $region45: #{tpu_custom_call.1} parent=1 // pred_fallthru
      _
    %346 = vsyncpa [#allocation4], 1
    %347 = vsyncpa [#allocation7], 1
    %348 = vsyncpa [#allocation5], 1

</llo_original>
